<compile_context>
chip_gen: v7x
topology: tpu7x:2x2x1
jax: 0.10.0
libtpu: 0.0.40
codegen_flags: <defaults>
</compile_context>

<pallas_src>
import jax
import jax.numpy as jnp
from jax.experimental import pallas as pl
from jax.experimental.pallas import tpu as pltpu

_BF16_SUBLANE = 16  # sublane packing multiple for bf16 MXU operands


def _triplet_kernel(a_ref, p_ref, n_ref, w1_ref, b1_ref, w2_ref, b2_ref,
                    o_ref, x_slab):
    """Fused embedding of all three triplet members.

    a/p/n: (B, D) f32   w1: (D, H) bf16   b1: (1, H) f32
    w2: (H, E_pad) bf16 b2: (1, E_pad) f32
    o:  (3*B_pad, E_pad) f32   x_slab: (3*B_pad, D) bf16 scratch
    """
    B = a_ref.shape[0]
    B_pad = x_slab.shape[0] // 3

    # Zero the slab (pad rows produce throw-away output rows; keep them clean),
    # then drop the three members in at sublane-aligned offsets 0 / B_pad / 2*B_pad,
    # casting f32 -> bf16 on the VPU (free under MXU latency).
    x_slab[...] = jnp.zeros_like(x_slab)
    x_slab[pl.ds(0, B), :] = a_ref[...].astype(x_slab.dtype)
    x_slab[pl.ds(B_pad, B), :] = p_ref[...].astype(x_slab.dtype)
    x_slab[pl.ds(2 * B_pad, B), :] = n_ref[...].astype(x_slab.dtype)

    x = x_slab[...]                                                   # (3*B_pad, D) bf16
    h = jnp.dot(x, w1_ref[...], preferred_element_type=jnp.float32)   # (3*B_pad, H) f32
    h = h + b1_ref[...]                                               # bias in f32
    h = jnp.maximum(h, 0.0).astype(w2_ref.dtype)                      # ReLU, bf16 for MXU
    o = jnp.dot(h, w2_ref[...], preferred_element_type=jnp.float32)   # (3*B_pad, E_pad)
    o_ref[...] = o + b2_ref[...]                                      # dense slab store


def prepare_params(params):
    """One-time (outside jit / per-step path) weight prep: bf16 + lane padding."""
    w1, b1, w2, b2 = params
    E = w2.shape[1]
    E_pad = max(128, ((E + 127) // 128) * 128)
    w1b = w1.astype(jnp.bfloat16)
    b1f = b1.astype(jnp.float32).reshape(1, -1)
    w2b = jnp.pad(w2, ((0, 0), (0, E_pad - E))).astype(jnp.bfloat16)
    b2f = jnp.pad(b2.astype(jnp.float32).reshape(1, -1), ((0, 0), (0, E_pad - E)))
    return w1b, b1f, w2b, b2f


def triplet_net_forward(anchor, positive, negative, prep_params, *, emb_dim):
    """Shared embedding net applied to (anchor, positive, negative).

    Inputs are NCHW float32 arrays of identical shape (B, C, H, W).
    Returns three (B, emb_dim) float32 embeddings.
    """
    w1b, b1f, w2b, b2f = prep_params
    B = anchor.shape[0]
    D = anchor.shape[1] * anchor.shape[2] * anchor.shape[3]
    H = w1b.shape[1]
    E_pad = w2b.shape[1]
    B_pad = ((B + _BF16_SUBLANE - 1) // _BF16_SUBLANE) * _BF16_SUBLANE
    M = 3 * B_pad

    # Layout-only flatten; NO dtype cast here (done in-kernel).
    a2 = anchor.reshape(B, D)
    p2 = positive.reshape(B, D)
    n2 = negative.reshape(B, D)

    flops = 2 * M * (D * H + H * E_pad)
    bytes_accessed = (3 * B * D * 4                      # f32 inputs
                      + (D * H + H * E_pad) * 2          # bf16 weights
                      + (H + E_pad) * 4                  # f32 biases
                      + M * E_pad * 4)                   # f32 output slab

    vmem = pl.BlockSpec(memory_space=pltpu.MemorySpace.VMEM)
    out = pl.pallas_call(
        _triplet_kernel,
        out_shape=jax.ShapeDtypeStruct((M, E_pad), jnp.float32),
        in_specs=[vmem] * 7,
        out_specs=vmem,
        scratch_shapes=[pltpu.VMEM((M, D), jnp.bfloat16)],
        compiler_params=pltpu.CompilerParams(vmem_limit_bytes=32 * 1024 * 1024),
        cost_estimate=pl.CostEstimate(flops=flops, transcendentals=0,
                                      bytes_accessed=bytes_accessed),
    )(a2, p2, n2, w1b, b1f, w2b, b2f)

    # Single layout op back to the module's (B, E) API (pad rows/lanes dropped).
    emb = out.reshape(3, B_pad, E_pad)[:, :B, :emb_dim]
    return emb[0], emb[1], emb[2]


def init_params(key, D, H, E):
    k1, k2, k3, k4 = jax.random.split(key, 4)
    w1 = jax.random.normal(k1, (D, H), jnp.float32) * 0.02
    b1 = jax.random.normal(k2, (1, H), jnp.float32) * 0.01
    w2 = jax.random.normal(k3, (H, E), jnp.float32) * 0.02
    b2 = jax.random.normal(k4, (1, E), jnp.float32) * 0.01
    return w1, b1, w2, b2


if __name__ == "__main__":
    # Small shapes consistent with an image triplet network.
    B, C, Hs, Ws = 2, 4, 16, 16        # NCHW inputs
    D = C * Hs * Ws                    # 1024 flattened features
    HID, EMB = 128, 64                 # hidden / embedding dims

    key = jax.random.PRNGKey(0)
    ka, kp, kn, kw = jax.random.split(key, 4)
    anchor = jax.random.normal(ka, (B, C, Hs, Ws), jnp.float32)
    positive = jax.random.normal(kp, (B, C, Hs, Ws), jnp.float32)
    negative = jax.random.normal(kn, (B, C, Hs, Ws), jnp.float32)

    params = init_params(kw, D, HID, EMB)
    prep = prepare_params(params)      # one-time weight cast/pad, outside jit

    fwd = jax.jit(triplet_net_forward, static_argnames=("emb_dim",))
    o1, o2, o3 = fwd(anchor, positive, negative, prep, emb_dim=EMB)
    jax.block_until_ready((o1, o2, o3))

    # Reference in plain JAX, mirroring the kernel's bf16-operand / f32-accum math.
    def ref_embed(x):
        w1, b1, w2, b2 = params
        xb = x.reshape(B, D).astype(jnp.bfloat16)
        h = jnp.dot(xb, w1.astype(jnp.bfloat16),
                    preferred_element_type=jnp.float32) + b1
        h = jnp.maximum(h, 0.0).astype(jnp.bfloat16)
        return jnp.dot(h, w2.astype(jnp.bfloat16),
                       preferred_element_type=jnp.float32) + b2

    assert o1.shape == (B, EMB) and o2.shape == (B, EMB) and o3.shape == (B, EMB)
    assert jnp.allclose(o1, ref_embed(anchor), atol=1e-2, rtol=1e-2)
    assert jnp.allclose(o2, ref_embed(positive), atol=1e-2, rtol=1e-2)
    assert jnp.allclose(o3, ref_embed(negative), atol=1e-2, rtol=1e-2)

    print("KERNEL_OK")
</pallas_src>

<mosaic_0001>
module attributes {stable_mosaic.version = 11 : i64} {
  func.func @_triplet_kernel(%arg0: memref<2x1024xf32, #tpu.memory_space<vmem>>, %arg1: memref<2x1024xf32, #tpu.memory_space<vmem>>, %arg2: memref<2x1024xf32, #tpu.memory_space<vmem>>, %arg3: memref<1024x128xbf16, #tpu.memory_space<vmem>>, %arg4: memref<1x128xf32, #tpu.memory_space<vmem>>, %arg5: memref<128x128xbf16, #tpu.memory_space<vmem>>, %arg6: memref<1x128xf32, #tpu.memory_space<vmem>>, %arg7: memref<48x128xf32, #tpu.memory_space<vmem>>, %arg8: memref<48x1024xbf16, #tpu.memory_space<vmem>>) attributes {dimension_semantics = [], scalar_prefetch = 0 : i64, scratch_operands = 1 : i64, tpu.core_type = #tpu.core_type<tc>} {
    %cst = arith.constant 0.000000e+00 : bf16
    %0 = vector.broadcast %cst : bf16 to vector<48x1024xbf16>
    %c0 = arith.constant 0 : index
    %c0_0 = arith.constant 0 : index
    %1 = vector.load %arg8[%c0, %c0_0] : memref<48x1024xbf16, #tpu.memory_space<vmem>>, vector<48x1024xbf16>
    tpu.vector_store %arg8[%c0, %c0_0], %0 {strides = array<i32>} : memref<48x1024xbf16, #tpu.memory_space<vmem>>, vector<48x1024xbf16>,
    %c0_1 = arith.constant 0 : index
    %c0_2 = arith.constant 0 : index
    %2 = vector.load %arg0[%c0_1, %c0_2] : memref<2x1024xf32, #tpu.memory_space<vmem>>, vector<2x1024xf32>
    %3 = arith.truncf %2 : vector<2x1024xf32> to vector<2x1024xbf16>
    %c0_3 = arith.constant 0 : index
    %c0_4 = arith.constant 0 : index
    %4 = vector.load %arg8[%c0_3, %c0_4] : memref<48x1024xbf16, #tpu.memory_space<vmem>>, vector<2x1024xbf16>
    tpu.vector_store %arg8[%c0_3, %c0_4], %3 {strides = array<i32>} : memref<48x1024xbf16, #tpu.memory_space<vmem>>, vector<2x1024xbf16>,
    %c0_5 = arith.constant 0 : index
    %c0_6 = arith.constant 0 : index
    %5 = vector.load %arg1[%c0_5, %c0_6] : memref<2x1024xf32, #tpu.memory_space<vmem>>, vector<2x1024xf32>
    %6 = arith.truncf %5 : vector<2x1024xf32> to vector<2x1024xbf16>
    %c16 = arith.constant 16 : index
    %c0_7 = arith.constant 0 : index
    %7 = vector.load %arg8[%c16, %c0_7] : memref<48x1024xbf16, #tpu.memory_space<vmem>>, vector<2x1024xbf16>
    tpu.vector_store %arg8[%c16, %c0_7], %6 {strides = array<i32>} : memref<48x1024xbf16, #tpu.memory_space<vmem>>, vector<2x1024xbf16>,
    %c0_8 = arith.constant 0 : index
    %c0_9 = arith.constant 0 : index
    %8 = vector.load %arg2[%c0_8, %c0_9] : memref<2x1024xf32, #tpu.memory_space<vmem>>, vector<2x1024xf32>
    %9 = arith.truncf %8 : vector<2x1024xf32> to vector<2x1024xbf16>
    %c32 = arith.constant 32 : index
    %c0_10 = arith.constant 0 : index
    %10 = vector.load %arg8[%c32, %c0_10] : memref<48x1024xbf16, #tpu.memory_space<vmem>>, vector<2x1024xbf16>
    tpu.vector_store %arg8[%c32, %c0_10], %9 {strides = array<i32>} : memref<48x1024xbf16, #tpu.memory_space<vmem>>, vector<2x1024xbf16>,
    %c0_11 = arith.constant 0 : index
    %c0_12 = arith.constant 0 : index
    %11 = vector.load %arg8[%c0_11, %c0_12] : memref<48x1024xbf16, #tpu.memory_space<vmem>>, vector<48x1024xbf16>
    %c0_13 = arith.constant 0 : index
    %c0_14 = arith.constant 0 : index
    %12 = vector.load %arg3[%c0_13, %c0_14] : memref<1024x128xbf16, #tpu.memory_space<vmem>>, vector<1024x128xbf16>
    %cst_15 = arith.constant dense<0.000000e+00> : vector<48x128xf32>
    %13 = tpu.matmul %11, %12, %cst_15 {dimension_numbers = #tpu.dot_dimension_numbers<[1], [0], [0], [1], [0, 0, 1, 1], [], []>} : vector<48x1024xbf16>, vector<1024x128xbf16>, vector<48x128xf32> -> vector<48x128xf32>
    %c0_16 = arith.constant 0 : index
    %c0_17 = arith.constant 0 : index
    %14 = vector.load %arg4[%c0_16, %c0_17] : memref<1x128xf32, #tpu.memory_space<vmem>>, vector<1x128xf32>
    %15 = vector.broadcast %14 : vector<1x128xf32> to vector<48x128xf32>
    %16 = arith.addf %13, %15 : vector<48x128xf32>
    %cst_18 = arith.constant 0.000000e+00 : f32
    %17 = vector.broadcast %cst_18 : f32 to vector<48x128xf32>
    %18 = arith.maximumf %16, %17 : vector<48x128xf32>
    %19 = arith.truncf %18 : vector<48x128xf32> to vector<48x128xbf16>
    %c0_19 = arith.constant 0 : index
    %c0_20 = arith.constant 0 : index
    %20 = vector.load %arg5[%c0_19, %c0_20] : memref<128x128xbf16, #tpu.memory_space<vmem>>, vector<128x128xbf16>
    %cst_21 = arith.constant dense<0.000000e+00> : vector<48x128xf32>
    %21 = tpu.matmul %19, %20, %cst_21 {dimension_numbers = #tpu.dot_dimension_numbers<[1], [0], [0], [1], [0, 0, 1, 1], [], []>} : vector<48x128xbf16>, vector<128x128xbf16>, vector<48x128xf32> -> vector<48x128xf32>
    %c0_22 = arith.constant 0 : index
    %c0_23 = arith.constant 0 : index
    %22 = vector.load %arg6[%c0_22, %c0_23] : memref<1x128xf32, #tpu.memory_space<vmem>>, vector<1x128xf32>
    %23 = vector.broadcast %22 : vector<1x128xf32> to vector<48x128xf32>
    %24 = arith.addf %21, %23 : vector<48x128xf32>
    %c0_24 = arith.constant 0 : index
    %c0_25 = arith.constant 0 : index
    %25 = vector.load %arg7[%c0_24, %c0_25] : memref<48x128xf32, #tpu.memory_space<vmem>>, vector<48x128xf32>
    tpu.vector_store %arg7[%c0_24, %c0_25], %24 {strides = array<i32>} : memref<48x128xf32, #tpu.memory_space<vmem>>, vector<48x128xf32>,
    return
  }
}

</mosaic_0001>

<llo_original>
// kernel: triplet_net_forward.1
$region0: #{triplet_net_forward.1}
  #allocation0 [shape = 'u32[]', space=smem, size = 0x4, offset = 0x4, fixed_abs, tag = 'smem constant byte address 0x4 - core index']
  #allocation1 [shape = 'u32[144,128]{1,0:T(1,128)}', space=vmem, size = 0x12000, scoped, tag = 'internal scratch']
  #allocation2 [shape = 'bf16[48,1024]{1,0:T(16,128)(2,1)}', space=vmem, size = 0x18000, scoped, tag = 'scratch operand']
  %s0 = inlined_call_operand.vmem [shape: f32[2,1024], index: 0, kind: input, shape index: {}]
  %s1 = inlined_call_operand.vmem [shape: f32[2,1024], index: 1, kind: input, shape index: {}]
  %s2 = inlined_call_operand.vmem [shape: f32[2,1024], index: 2, kind: input, shape index: {}]
  %s3 = inlined_call_operand.hbm [shape: bf16[1024,128], index: 3, kind: input, shape index: {}]
  %s4 = inlined_call_operand.vmem [shape: f32[1,128], index: 4, kind: input, shape index: {}]
  %s5 = inlined_call_operand.vmem [shape: bf16[128,128], index: 5, kind: input, shape index: {}]
  %s6 = inlined_call_operand.vmem [shape: f32[1,128], index: 6, kind: input, shape index: {}]
  %s7 = inlined_call_operand.vmem [shape: f32[48,128], index: 7, kind: output, shape index: {}]
  %s8 = sld [smem:[#allocation0]]
  $region42: #{triplet_net_forward.1} parent=0
    _
  %s10 = ssub.s32 1, %s8
  %s11 = scalar_select 0, %s10, %s8
  $region1: #{triplet_net_forward.1} parent=0
    #allocation3 [shape = 'u8[262144]{0}', space=vmem, size = 0x40000, scoped, tag = 'input window, operand 3, single buffered']
    #allocation4 [shape = 's32[1]{0}', space=sflag, size = 0x4, scoped, tag = 'scoped memory for triplet_net_forward.1']
    %12 = vsyncpa [#allocation4], 0
    // Predicated region
    $region2: #{triplet_net_forward.1} parent=1 // pred_check
      _
    $region3: #{triplet_net_forward.1} parent=1 // pred_check_branch
      %14 = sbr.rel (0) target = $region5
    $region4: #{triplet_net_forward.1} parent=1 // pred_region
      _
    $region5: #{triplet_net_forward.1} parent=1 // pred_fallthru
      _
    // Predicated region
    $region6: #{triplet_net_forward.1} parent=1 // pred_check
      _
    $region7: #{triplet_net_forward.1} parent=1 // pred_check_branch
      %16 = sbr.rel (0) target = $region9
    $region8: #{triplet_net_forward.1} parent=1 // pred_region
      _
    $region9: #{triplet_net_forward.1} parent=1 // pred_fallthru
      _
    // Predicated region
    $region10: #{triplet_net_forward.1} parent=1 // pred_check
      _
    $region11: #{triplet_net_forward.1} parent=1 // pred_check_branch
      %18 = sbr.rel (0) target = $region13
    $region12: #{triplet_net_forward.1} parent=1 // pred_region
      _
    $region13: #{triplet_net_forward.1} parent=1 // pred_fallthru
      _
    // Predicated region
    $region14: #{triplet_net_forward.1} parent=1 // pred_check
      _
    $region15: #{triplet_net_forward.1} parent=1 // pred_check_branch
      %20 = sbr.rel (0) target = $region17
    $region16: #{triplet_net_forward.1} parent=1 // pred_region
      %s22 = ssub.s32 8192, 8192
      %23 = vsyncadd [#allocation4], %s22
      %s24 = sshll.u32 [#allocation3], 4
      %s25 = int_to_ptr.vmem [resolvable:$true] %s24
      %30 = dma.hbm_to_vmem [thread:$0]  %s3, 8192, %s25, [#allocation4], 64, 64, 4
    $region17: #{triplet_net_forward.1} parent=1 // pred_fallthru
      _
    // Predicated region
    $region18: #{triplet_net_forward.1} parent=1 // pred_check
      _
    $region19: #{triplet_net_forward.1} parent=1 // pred_check_branch
      %32 = sbr.rel (0) target = $region21
    $region20: #{triplet_net_forward.1} parent=1 // pred_region
      _
    $region21: #{triplet_net_forward.1} parent=1 // pred_fallthru
      _
    // Predicated region
    $region22: #{triplet_net_forward.1} parent=1 // pred_check
      _
    $region23: #{triplet_net_forward.1} parent=1 // pred_check_branch
      %34 = sbr.rel (0) target = $region25
    $region24: #{triplet_net_forward.1} parent=1 // pred_region
      _
    $region25: #{triplet_net_forward.1} parent=1 // pred_fallthru
      _
    // Predicated region
    $region26: #{triplet_net_forward.1} parent=1 // pred_check
      _
    $region27: #{triplet_net_forward.1} parent=1 // pred_check_branch
      %36 = sbr.rel (0) target = $region29
    $region28: #{triplet_net_forward.1} parent=1 // pred_region
      _
    $region29: #{triplet_net_forward.1} parent=1 // pred_fallthru
      _
    // Predicated region
    $region30: #{triplet_net_forward.1} parent=1 // pred_check
      _
    $region31: #{triplet_net_forward.1} parent=1 // pred_check_branch
      %38 = sbr.rel (0) target = $region33
    $region32: #{triplet_net_forward.1} parent=1 // pred_region
      %39 = dma.done [#allocation4], 8192
    $region33: #{triplet_net_forward.1} parent=1 // pred_fallthru
      _
    %41 = vst [vmem:[#allocation2] sm:$0xff] 0
    %42 = vst [vmem:[#allocation2 + $0x8] sm:$0xff] 0
    %43 = vst [vmem:[#allocation2 + $0x10] sm:$0xff] 0
    %44 = vst [vmem:[#allocation2 + $0x18] sm:$0xff] 0
    %45 = vst [vmem:[#allocation2 + $0x20] sm:$0xff] 0
    %46 = vst [vmem:[#allocation2 + $0x28] sm:$0xff] 0
    %47 = vst [vmem:[#allocation2 + $0x30] sm:$0xff] 0
    %48 = vst [vmem:[#allocation2 + $0x38] sm:$0xff] 0
    %49 = vst [vmem:[#allocation2 + $0x40] sm:$0xff] 0
    %50 = vst [vmem:[#allocation2 + $0x48] sm:$0xff] 0
    %51 = vst [vmem:[#allocation2 + $0x50] sm:$0xff] 0
    %52 = vst [vmem:[#allocation2 + $0x58] sm:$0xff] 0
    %53 = vst [vmem:[#allocation2 + $0x60] sm:$0xff] 0
    %54 = vst [vmem:[#allocation2 + $0x68] sm:$0xff] 0
    %55 = vst [vmem:[#allocation2 + $0x70] sm:$0xff] 0
    %56 = vst [vmem:[#allocation2 + $0x78] sm:$0xff] 0
    %57 = vst [vmem:[#allocation2 + $0x80] sm:$0xff] 0
    %58 = vst [vmem:[#allocation2 + $0x88] sm:$0xff] 0
    %59 = vst [vmem:[#allocation2 + $0x90] sm:$0xff] 0
    %60 = vst [vmem:[#allocation2 + $0x98] sm:$0xff] 0
    %61 = vst [vmem:[#allocation2 + $0xa0] sm:$0xff] 0
    %62 = vst [vmem:[#allocation2 + $0xa8] sm:$0xff] 0
    %63 = vst [vmem:[#allocation2 + $0xb0] sm:$0xff] 0
    %64 = vst [vmem:[#allocation2 + $0xb8] sm:$0xff] 0
    %v65 = vld [vmem:[%s0] sm:$0xff]
    %v66 = vld [vmem:[%s0 + $0x8] sm:$0xff]
    %v69 = vcombine.high %v65, %v65
    %v71 = vunpack.c.l.s4 1983009808
    %v72 = vunpack.c.0.s8 %v71
    %v73 = vlaneseq
    %v74 = vshrl.u32 %v73, 7
    %v75 = vsub.s32 %v72, %v74
    %v76 = vrot.slane %v65, %v75
    %v78 = vunpack.c.l.s4 1983009808
    %v79 = vunpack.c.0.s8 %v78
    %v80 = vlaneseq
    %v81 = vshrl.u32 %v80, 7
    %v82 = vsub.s32 %v79, %v81
    %v83 = vrot.slane %v69, %v82
    %v84 = vcombine.high %v76, %v76
    %v85 = vcombine.high %v83, %v83
    %v86 = vcombine.high %v66, %v66
    %v88 = vunpack.c.l.s4 1983009808
    %v89 = vunpack.c.0.s8 %v88
    %v90 = vlaneseq
    %v91 = vshrl.u32 %v90, 7
    %v92 = vsub.s32 %v89, %v91
    %v93 = vrot.slane %v66, %v92
    %v95 = vunpack.c.l.s4 1983009808
    %v96 = vunpack.c.0.s8 %v95
    %v97 = vlaneseq
    %v98 = vshrl.u32 %v97, 7
    %v99 = vsub.s32 %v96, %v98
    %v100 = vrot.slane %v86, %v99
    %v101 = vcombine.high %v93, %v93
    %v102 = vcombine.high %v100, %v100
    %v111 = vpack.c.bf16 %v76, %v76
    %v112 = vpack.c.bf16 %v84, %v84
    %v113 = vpack.c.bf16 %v83, %v83
    %v114 = vpack.c.bf16 %v85, %v85
    %v115 = vpack.c.bf16 %v93, %v93
    %v116 = vpack.c.bf16 %v101, %v101
    %v117 = vpack.c.bf16 %v100, %v100
    %v118 = vpack.c.bf16 %v102, %v102
    %119 = vst [vmem:[#allocation2] sm:$0x1] %v111
    %120 = vst [vmem:[#allocation2 + $0x8] sm:$0x1] %v112
    %121 = vst [vmem:[#allocation2 + $0x10] sm:$0x1] %v113
    %122 = vst [vmem:[#allocation2 + $0x18] sm:$0x1] %v114
    %123 = vst [vmem:[#allocation2 + $0x20] sm:$0x1] %v115
    %124 = vst [vmem:[#allocation2 + $0x28] sm:$0x1] %v116
    %125 = vst [vmem:[#allocation2 + $0x30] sm:$0x1] %v117
    %126 = vst [vmem:[#allocation2 + $0x38] sm:$0x1] %v118
    %v127 = vld [vmem:[%s1] sm:$0xff]
    %v128 = vld [vmem:[%s1 + $0x8] sm:$0xff]
    %v131 = vcombine.high %v127, %v127
    %v133 = vunpack.c.l.s4 1983009808
    %v134 = vunpack.c.0.s8 %v133
    %v135 = vlaneseq
    %v136 = vshrl.u32 %v135, 7
    %v137 = vsub.s32 %v134, %v136
    %v138 = vrot.slane %v127, %v137
    %v140 = vunpack.c.l.s4 1983009808
    %v141 = vunpack.c.0.s8 %v140
    %v142 = vlaneseq
    %v143 = vshrl.u32 %v142, 7
    %v144 = vsub.s32 %v141, %v143
    %v145 = vrot.slane %v131, %v144
    %v146 = vcombine.high %v138, %v138
    %v147 = vcombine.high %v145, %v145
    %v148 = vcombine.high %v128, %v128
    %v150 = vunpack.c.l.s4 1983009808
    %v151 = vunpack.c.0.s8 %v150
    %v152 = vlaneseq
    %v153 = vshrl.u32 %v152, 7
    %v154 = vsub.s32 %v151, %v153
    %v155 = vrot.slane %v128, %v154
    %v157 = vunpack.c.l.s4 1983009808
    %v158 = vunpack.c.0.s8 %v157
    %v159 = vlaneseq
    %v160 = vshrl.u32 %v159, 7
    %v161 = vsub.s32 %v158, %v160
    %v162 = vrot.slane %v148, %v161
    %v163 = vcombine.high %v155, %v155
    %v164 = vcombine.high %v162, %v162
    %v173 = vpack.c.bf16 %v138, %v138
    %v174 = vpack.c.bf16 %v146, %v146
    %v175 = vpack.c.bf16 %v145, %v145
    %v176 = vpack.c.bf16 %v147, %v147
    %v177 = vpack.c.bf16 %v155, %v155
    %v178 = vpack.c.bf16 %v163, %v163
    %v179 = vpack.c.bf16 %v162, %v162
    %v180 = vpack.c.bf16 %v164, %v164
    %181 = vst [vmem:[#allocation2 + $0x40] sm:$0x1] %v173
    %182 = vst [vmem:[#allocation2 + $0x48] sm:$0x1] %v174
    %183 = vst [vmem:[#allocation2 + $0x50] sm:$0x1] %v175
    %184 = vst [vmem:[#allocation2 + $0x58] sm:$0x1] %v176
    %185 = vst [vmem:[#allocation2 + $0x60] sm:$0x1] %v177
    %186 = vst [vmem:[#allocation2 + $0x68] sm:$0x1] %v178
    %187 = vst [vmem:[#allocation2 + $0x70] sm:$0x1] %v179
    %188 = vst [vmem:[#allocation2 + $0x78] sm:$0x1] %v180
    %v189 = vld [vmem:[%s2] sm:$0xff]
    %v190 = vld [vmem:[%s2 + $0x8] sm:$0xff]
    %v193 = vcombine.high %v189, %v189
    %v195 = vunpack.c.l.s4 1983009808
    %v196 = vunpack.c.0.s8 %v195
    %v197 = vlaneseq
    %v198 = vshrl.u32 %v197, 7
    %v199 = vsub.s32 %v196, %v198
    %v200 = vrot.slane %v189, %v199
    %v202 = vunpack.c.l.s4 1983009808
    %v203 = vunpack.c.0.s8 %v202
    %v204 = vlaneseq
    %v205 = vshrl.u32 %v204, 7
    %v206 = vsub.s32 %v203, %v205
    %v207 = vrot.slane %v193, %v206
    %v208 = vcombine.high %v200, %v200
    %v209 = vcombine.high %v207, %v207
    %v210 = vcombine.high %v190, %v190
    %v212 = vunpack.c.l.s4 1983009808
    %v213 = vunpack.c.0.s8 %v212
    %v214 = vlaneseq
    %v215 = vshrl.u32 %v214, 7
    %v216 = vsub.s32 %v213, %v215
    %v217 = vrot.slane %v190, %v216
    %v219 = vunpack.c.l.s4 1983009808
    %v220 = vunpack.c.0.s8 %v219
    %v221 = vlaneseq
    %v222 = vshrl.u32 %v221, 7
    %v223 = vsub.s32 %v220, %v222
    %v224 = vrot.slane %v210, %v223
    %v225 = vcombine.high %v217, %v217
    %v226 = vcombine.high %v224, %v224
    %v235 = vpack.c.bf16 %v200, %v200
    %v236 = vpack.c.bf16 %v208, %v208
    %v237 = vpack.c.bf16 %v207, %v207
    %v238 = vpack.c.bf16 %v209, %v209
    %v239 = vpack.c.bf16 %v217, %v217
    %v240 = vpack.c.bf16 %v225, %v225
    %v241 = vpack.c.bf16 %v224, %v224
    %v242 = vpack.c.bf16 %v226, %v226
    %243 = vst [vmem:[#allocation2 + $0x80] sm:$0x1] %v235
    %244 = vst [vmem:[#allocation2 + $0x88] sm:$0x1] %v236
    %245 = vst [vmem:[#allocation2 + $0x90] sm:$0x1] %v237
    %246 = vst [vmem:[#allocation2 + $0x98] sm:$0x1] %v238
    %247 = vst [vmem:[#allocation2 + $0xa0] sm:$0x1] %v239
    %248 = vst [vmem:[#allocation2 + $0xa8] sm:$0x1] %v240
    %249 = vst [vmem:[#allocation2 + $0xb0] sm:$0x1] %v241
    %250 = vst [vmem:[#allocation2 + $0xb8] sm:$0x1] %v242
    %v251 = vld [vmem:[#allocation2] sm:$0xff]
    %v252 = vld [vmem:[#allocation2 + $0x8] sm:$0xff]
    %v253 = vld [vmem:[#allocation2 + $0x10] sm:$0xff]
    %v254 = vld [vmem:[#allocation2 + $0x18] sm:$0xff]
    %v255 = vld [vmem:[#allocation2 + $0x20] sm:$0xff]
    %v256 = vld [vmem:[#allocation2 + $0x28] sm:$0xff]
    %v257 = vld [vmem:[#allocation2 + $0x30] sm:$0xff]
    %v258 = vld [vmem:[#allocation2 + $0x38] sm:$0xff]
    %v259 = vld [vmem:[#allocation2 + $0x40] sm:$0xff]
    %v260 = vld [vmem:[#allocation2 + $0x48] sm:$0xff]
    %v261 = vld [vmem:[#allocation2 + $0x50] sm:$0xff]
    %v262 = vld [vmem:[#allocation2 + $0x58] sm:$0xff]
    %v263 = vld [vmem:[#allocation2 + $0x60] sm:$0xff]
    %v264 = vld [vmem:[#allocation2 + $0x68] sm:$0xff]
    %v265 = vld [vmem:[#allocation2 + $0x70] sm:$0xff]
    %v266 = vld [vmem:[#allocation2 + $0x78] sm:$0xff]
    %v267 = vld [vmem:[#allocation2 + $0x80] sm:$0xff]
    %v268 = vld [vmem:[#allocation2 + $0x88] sm:$0xff]
    %v269 = vld [vmem:[#allocation2 + $0x90] sm:$0xff]
    %v270 = vld [vmem:[#allocation2 + $0x98] sm:$0xff]
    %v271 = vld [vmem:[#allocation2 + $0xa0] sm:$0xff]
    %v272 = vld [vmem:[#allocation2 + $0xa8] sm:$0xff]
    %v273 = vld [vmem:[#allocation2 + $0xb0] sm:$0xff]
    %v274 = vld [vmem:[#allocation2 + $0xb8] sm:$0xff]
    %v275 = vld [vmem:[#allocation3] sm:$0xf]
    %v276 = vld [vmem:[#allocation3 + $0x4] sm:$0xf]
    %v277 = vld [vmem:[#allocation3 + $0x8] sm:$0xf]
    %v278 = vld [vmem:[#allocation3 + $0xc] sm:$0xf]
    %v279 = vld [vmem:[#allocation3 + $0x10] sm:$0xf]
    %v280 = vld [vmem:[#allocation3 + $0x14] sm:$0xf]
    %v281 = vld [vmem:[#allocation3 + $0x18] sm:$0xf]
    %v282 = vld [vmem:[#allocation3 + $0x1c] sm:$0xf]
    %v283 = vld [vmem:[#allocation3 + $0x20] sm:$0xf]
    %v284 = vld [vmem:[#allocation3 + $0x24] sm:$0xf]
    %v285 = vld [vmem:[#allocation3 + $0x28] sm:$0xf]
    %v286 = vld [vmem:[#allocation3 + $0x2c] sm:$0xf]
    %v287 = vld [vmem:[#allocation3 + $0x30] sm:$0xf]
    %v288 = vld [vmem:[#allocation3 + $0x34] sm:$0xf]
    %v289 = vld [vmem:[#allocation3 + $0x38] sm:$0xf]
    %v290 = vld [vmem:[#allocation3 + $0x3c] sm:$0xf]
    %v291 = vld [vmem:[#allocation3 + $0x40] sm:$0xf]
    %v292 = vld [vmem:[#allocation3 + $0x44] sm:$0xf]
    %v293 = vld [vmem:[#allocation3 + $0x48] sm:$0xf]
    %v294 = vld [vmem:[#allocation3 + $0x4c] sm:$0xf]
    %v295 = vld [vmem:[#allocation3 + $0x50] sm:$0xf]
    %v296 = vld [vmem:[#allocation3 + $0x54] sm:$0xf]
    %v297 = vld [vmem:[#allocation3 + $0x58] sm:$0xf]
    %v298 = vld [vmem:[#allocation3 + $0x5c] sm:$0xf]
    %v299 = vld [vmem:[#allocation3 + $0x60] sm:$0xf]
    %v300 = vld [vmem:[#allocation3 + $0x64] sm:$0xf]
    %v301 = vld [vmem:[#allocation3 + $0x68] sm:$0xf]
    %v302 = vld [vmem:[#allocation3 + $0x6c] sm:$0xf]
    %v303 = vld [vmem:[#allocation3 + $0x70] sm:$0xf]
    %v304 = vld [vmem:[#allocation3 + $0x74] sm:$0xf]
    %v305 = vld [vmem:[#allocation3 + $0x78] sm:$0xf]
    %v306 = vld [vmem:[#allocation3 + $0x7c] sm:$0xf]
    %v307 = vld [vmem:[#allocation3 + $0x80] sm:$0xf]
    %v308 = vld [vmem:[#allocation3 + $0x84] sm:$0xf]
    %v309 = vld [vmem:[#allocation3 + $0x88] sm:$0xf]
    %v310 = vld [vmem:[#allocation3 + $0x8c] sm:$0xf]
    %v311 = vld [vmem:[#allocation3 + $0x90] sm:$0xf]
    %v312 = vld [vmem:[#allocation3 + $0x94] sm:$0xf]
    %v313 = vld [vmem:[#allocation3 + $0x98] sm:$0xf]
    %v314 = vld [vmem:[#allocation3 + $0x9c] sm:$0xf]
    %v315 = vld [vmem:[#allocation3 + $0xa0] sm:$0xf]
    %v316 = vld [vmem:[#allocation3 + $0xa4] sm:$0xf]
    %v317 = vld [vmem:[#allocation3 + $0xa8] sm:$0xf]
    %v318 = vld [vmem:[#allocation3 + $0xac] sm:$0xf]
    %v319 = vld [vmem:[#allocation3 + $0xb0] sm:$0xf]
    %v320 = vld [vmem:[#allocation3 + $0xb4] sm:$0xf]
    %v321 = vld [vmem:[#allocation3 + $0xb8] sm:$0xf]
    %v322 = vld [vmem:[#allocation3 + $0xbc] sm:$0xf]
    %v323 = vld [vmem:[#allocation3 + $0xc0] sm:$0xf]
    %v324 = vld [vmem:[#allocation3 + $0xc4] sm:$0xf]
    %v325 = vld [vmem:[#allocation3 + $0xc8] sm:$0xf]
    %v326 = vld [vmem:[#allocation3 + $0xcc] sm:$0xf]
    %v327 = vld [vmem:[#allocation3 + $0xd0] sm:$0xf]
    %v328 = vld [vmem:[#allocation3 + $0xd4] sm:$0xf]
    %v329 = vld [vmem:[#allocation3 + $0xd8] sm:$0xf]
    %v330 = vld [vmem:[#allocation3 + $0xdc] sm:$0xf]
    %v331 = vld [vmem:[#allocation3 + $0xe0] sm:$0xf]
    %v332 = vld [vmem:[#allocation3 + $0xe4] sm:$0xf]
    %v333 = vld [vmem:[#allocation3 + $0xe8] sm:$0xf]
    %v334 = vld [vmem:[#allocation3 + $0xec] sm:$0xf]
    %v335 = vld [vmem:[#allocation3 + $0xf0] sm:$0xf]
    %v336 = vld [vmem:[#allocation3 + $0xf4] sm:$0xf]
    %v337 = vld [vmem:[#allocation3 + $0xf8] sm:$0xf]
    %v338 = vld [vmem:[#allocation3 + $0xfc] sm:$0xf]
    %v339 = vld [vmem:[#allocation3 + $0x100] sm:$0xf]
    %v340 = vld [vmem:[#allocation3 + $0x104] sm:$0xf]
    %v341 = vld [vmem:[#allocation3 + $0x108] sm:$0xf]
    %v342 = vld [vmem:[#allocation3 + $0x10c] sm:$0xf]
    %v343 = vld [vmem:[#allocation3 + $0x110] sm:$0xf]
    %v344 = vld [vmem:[#allocation3 + $0x114] sm:$0xf]
    %v345 = vld [vmem:[#allocation3 + $0x118] sm:$0xf]
    %v346 = vld [vmem:[#allocation3 + $0x11c] sm:$0xf]
    %v347 = vld [vmem:[#allocation3 + $0x120] sm:$0xf]
    %v348 = vld [vmem:[#allocation3 + $0x124] sm:$0xf]
    %v349 = vld [vmem:[#allocation3 + $0x128] sm:$0xf]
    %v350 = vld [vmem:[#allocation3 + $0x12c] sm:$0xf]
    %v351 = vld [vmem:[#allocation3 + $0x130] sm:$0xf]
    %v352 = vld [vmem:[#allocation3 + $0x134] sm:$0xf]
    %v353 = vld [vmem:[#allocation3 + $0x138] sm:$0xf]
    %v354 = vld [vmem:[#allocation3 + $0x13c] sm:$0xf]
    %v355 = vld [vmem:[#allocation3 + $0x140] sm:$0xf]
    %v356 = vld [vmem:[#allocation3 + $0x144] sm:$0xf]
    %v357 = vld [vmem:[#allocation3 + $0x148] sm:$0xf]
    %v358 = vld [vmem:[#allocation3 + $0x14c] sm:$0xf]
    %v359 = vld [vmem:[#allocation3 + $0x150] sm:$0xf]
    %v360 = vld [vmem:[#allocation3 + $0x154] sm:$0xf]
    %v361 = vld [vmem:[#allocation3 + $0x158] sm:$0xf]
    %v362 = vld [vmem:[#allocation3 + $0x15c] sm:$0xf]
    %v363 = vld [vmem:[#allocation3 + $0x160] sm:$0xf]
    %v364 = vld [vmem:[#allocation3 + $0x164] sm:$0xf]
    %v365 = vld [vmem:[#allocation3 + $0x168] sm:$0xf]
    %v366 = vld [vmem:[#allocation3 + $0x16c] sm:$0xf]
    %v367 = vld [vmem:[#allocation3 + $0x170] sm:$0xf]
    %v368 = vld [vmem:[#allocation3 + $0x174] sm:$0xf]
    %v369 = vld [vmem:[#allocation3 + $0x178] sm:$0xf]
    %v370 = vld [vmem:[#allocation3 + $0x17c] sm:$0xf]
    %v371 = vld [vmem:[#allocation3 + $0x180] sm:$0xf]
    %v372 = vld [vmem:[#allocation3 + $0x184] sm:$0xf]
    %v373 = vld [vmem:[#allocation3 + $0x188] sm:$0xf]
    %v374 = vld [vmem:[#allocation3 + $0x18c] sm:$0xf]
    %v375 = vld [vmem:[#allocation3 + $0x190] sm:$0xf]
    %v376 = vld [vmem:[#allocation3 + $0x194] sm:$0xf]
    %v377 = vld [vmem:[#allocation3 + $0x198] sm:$0xf]
    %v378 = vld [vmem:[#allocation3 + $0x19c] sm:$0xf]
    %v379 = vld [vmem:[#allocation3 + $0x1a0] sm:$0xf]
    %v380 = vld [vmem:[#allocation3 + $0x1a4] sm:$0xf]
    %v381 = vld [vmem:[#allocation3 + $0x1a8] sm:$0xf]
    %v382 = vld [vmem:[#allocation3 + $0x1ac] sm:$0xf]
    %v383 = vld [vmem:[#allocation3 + $0x1b0] sm:$0xf]
    %v384 = vld [vmem:[#allocation3 + $0x1b4] sm:$0xf]
    %v385 = vld [vmem:[#allocation3 + $0x1b8] sm:$0xf]
    %v386 = vld [vmem:[#allocation3 + $0x1bc] sm:$0xf]
    %v387 = vld [vmem:[#allocation3 + $0x1c0] sm:$0xf]
    %v388 = vld [vmem:[#allocation3 + $0x1c4] sm:$0xf]
    %v389 = vld [vmem:[#allocation3 + $0x1c8] sm:$0xf]
    %v390 = vld [vmem:[#allocation3 + $0x1cc] sm:$0xf]
    %v391 = vld [vmem:[#allocation3 + $0x1d0] sm:$0xf]
    %v392 = vld [vmem:[#allocation3 + $0x1d4] sm:$0xf]
    %v393 = vld [vmem:[#allocation3 + $0x1d8] sm:$0xf]
    %v394 = vld [vmem:[#allocation3 + $0x1dc] sm:$0xf]
    %v395 = vld [vmem:[#allocation3 + $0x1e0] sm:$0xf]
    %v396 = vld [vmem:[#allocation3 + $0x1e4] sm:$0xf]
    %v397 = vld [vmem:[#allocation3 + $0x1e8] sm:$0xf]
    %v398 = vld [vmem:[#allocation3 + $0x1ec] sm:$0xf]
    %v399 = vld [vmem:[#allocation3 + $0x1f0] sm:$0xf]
    %v400 = vld [vmem:[#allocation3 + $0x1f4] sm:$0xf]
    %v401 = vld [vmem:[#allocation3 + $0x1f8] sm:$0xf]
    %v402 = vld [vmem:[#allocation3 + $0x1fc] sm:$0xf]
    %v403 = vld [vmem:[%s4] sm:$0x1]
    %v405 = vlaneseq
    %v406 = vshrl.u32 %v405, 7
    %v407 = vsub.s32 0, %v406
    %v408 = vrot.slane %v403, %v407
    %v538 = vunpack.c.l.b16 %v275
    %v539 = vunpack.c.l.b16 %v276
    %v540 = vunpack.c.l.b16 %v277
    %v541 = vunpack.c.l.b16 %v278
    %v542 = vunpack.c.l.b16 %v279
    %v543 = vunpack.c.l.b16 %v280
    %v544 = vunpack.c.l.b16 %v281
    %v545 = vunpack.c.l.b16 %v282
    %v546 = vunpack.c.l.b16 %v283
    %v547 = vunpack.c.l.b16 %v284
    %v548 = vunpack.c.l.b16 %v285
    %v549 = vunpack.c.l.b16 %v286
    %v550 = vunpack.c.l.b16 %v287
    %v551 = vunpack.c.l.b16 %v288
    %v552 = vunpack.c.l.b16 %v289
    %v553 = vunpack.c.l.b16 %v290
    %v554 = vunpack.c.l.b16 %v291
    %v555 = vunpack.c.l.b16 %v292
    %v556 = vunpack.c.l.b16 %v293
    %v557 = vunpack.c.l.b16 %v294
    %v558 = vunpack.c.l.b16 %v295
    %v559 = vunpack.c.l.b16 %v296
    %v560 = vunpack.c.l.b16 %v297
    %v561 = vunpack.c.l.b16 %v298
    %v562 = vunpack.c.l.b16 %v299
    %v563 = vunpack.c.l.b16 %v300
    %v564 = vunpack.c.l.b16 %v301
    %v565 = vunpack.c.l.b16 %v302
    %v566 = vunpack.c.l.b16 %v303
    %v567 = vunpack.c.l.b16 %v304
    %v568 = vunpack.c.l.b16 %v305
    %v569 = vunpack.c.l.b16 %v306
    %v570 = vunpack.c.l.b16 %v307
    %v571 = vunpack.c.l.b16 %v308
    %v572 = vunpack.c.l.b16 %v309
    %v573 = vunpack.c.l.b16 %v310
    %v574 = vunpack.c.l.b16 %v311
    %v575 = vunpack.c.l.b16 %v312
    %v576 = vunpack.c.l.b16 %v313
    %v577 = vunpack.c.l.b16 %v314
    %v578 = vunpack.c.l.b16 %v315
    %v579 = vunpack.c.l.b16 %v316
    %v580 = vunpack.c.l.b16 %v317
    %v581 = vunpack.c.l.b16 %v318
    %v582 = vunpack.c.l.b16 %v319
    %v583 = vunpack.c.l.b16 %v320
    %v584 = vunpack.c.l.b16 %v321
    %v585 = vunpack.c.l.b16 %v322
    %v586 = vunpack.c.l.b16 %v323
    %v587 = vunpack.c.l.b16 %v324
    %v588 = vunpack.c.l.b16 %v325
    %v589 = vunpack.c.l.b16 %v326
    %v590 = vunpack.c.l.b16 %v327
    %v591 = vunpack.c.l.b16 %v328
    %v592 = vunpack.c.l.b16 %v329
    %v593 = vunpack.c.l.b16 %v330
    %v594 = vunpack.c.l.b16 %v331
    %v595 = vunpack.c.l.b16 %v332
    %v596 = vunpack.c.l.b16 %v333
    %v597 = vunpack.c.l.b16 %v334
    %v598 = vunpack.c.l.b16 %v335
    %v599 = vunpack.c.l.b16 %v336
    %v600 = vunpack.c.l.b16 %v337
    %v601 = vunpack.c.l.b16 %v338
    %v602 = vunpack.c.l.b16 %v339
    %v603 = vunpack.c.l.b16 %v340
    %v604 = vunpack.c.l.b16 %v341
    %v605 = vunpack.c.l.b16 %v342
    %v606 = vunpack.c.l.b16 %v343
    %v607 = vunpack.c.l.b16 %v344
    %v608 = vunpack.c.l.b16 %v345
    %v609 = vunpack.c.l.b16 %v346
    %v610 = vunpack.c.l.b16 %v347
    %v611 = vunpack.c.l.b16 %v348
    %v612 = vunpack.c.l.b16 %v349
    %v613 = vunpack.c.l.b16 %v350
    %v614 = vunpack.c.l.b16 %v351
    %v615 = vunpack.c.l.b16 %v352
    %v616 = vunpack.c.l.b16 %v353
    %v617 = vunpack.c.l.b16 %v354
    %v618 = vunpack.c.l.b16 %v355
    %v619 = vunpack.c.l.b16 %v356
    %v620 = vunpack.c.l.b16 %v357
    %v621 = vunpack.c.l.b16 %v358
    %v622 = vunpack.c.l.b16 %v359
    %v623 = vunpack.c.l.b16 %v360
    %v624 = vunpack.c.l.b16 %v361
    %v625 = vunpack.c.l.b16 %v362
    %v626 = vunpack.c.l.b16 %v363
    %v627 = vunpack.c.l.b16 %v364
    %v628 = vunpack.c.l.b16 %v365
    %v629 = vunpack.c.l.b16 %v366
    %v630 = vunpack.c.l.b16 %v367
    %v631 = vunpack.c.l.b16 %v368
    %v632 = vunpack.c.l.b16 %v369
    %v633 = vunpack.c.l.b16 %v370
    %v634 = vunpack.c.l.b16 %v371
    %v635 = vunpack.c.l.b16 %v372
    %v636 = vunpack.c.l.b16 %v373
    %v637 = vunpack.c.l.b16 %v374
    %v638 = vunpack.c.l.b16 %v375
    %v639 = vunpack.c.l.b16 %v376
    %v640 = vunpack.c.l.b16 %v377
    %v641 = vunpack.c.l.b16 %v378
    %v642 = vunpack.c.l.b16 %v379
    %v643 = vunpack.c.l.b16 %v380
    %v644 = vunpack.c.l.b16 %v381
    %v645 = vunpack.c.l.b16 %v382
    %v646 = vunpack.c.l.b16 %v383
    %v647 = vunpack.c.l.b16 %v384
    %v648 = vunpack.c.l.b16 %v385
    %v649 = vunpack.c.l.b16 %v386
    %v650 = vunpack.c.l.b16 %v387
    %v651 = vunpack.c.l.b16 %v388
    %v652 = vunpack.c.l.b16 %v389
    %v653 = vunpack.c.l.b16 %v390
    %v654 = vunpack.c.l.b16 %v391
    %v655 = vunpack.c.l.b16 %v392
    %v656 = vunpack.c.l.b16 %v393
    %v657 = vunpack.c.l.b16 %v394
    %v658 = vunpack.c.l.b16 %v395
    %v659 = vunpack.c.l.b16 %v396
    %v660 = vunpack.c.l.b16 %v397
    %v661 = vunpack.c.l.b16 %v398
    %v662 = vunpack.c.l.b16 %v399
    %v663 = vunpack.c.l.b16 %v400
    %v664 = vunpack.c.l.b16 %v401
    %v665 = vunpack.c.l.b16 %v402
    %v666 = vpack.c.b16 %v539, %v538
    %v667 = vpack.c.b16 %v541, %v540
    %v668 = vpack.c.b16 %v543, %v542
    %v669 = vpack.c.b16 %v545, %v544
    %v670 = vpack.c.b16 %v547, %v546
    %v671 = vpack.c.b16 %v549, %v548
    %v672 = vpack.c.b16 %v551, %v550
    %v673 = vpack.c.b16 %v553, %v552
    %v674 = vpack.c.b16 %v555, %v554
    %v675 = vpack.c.b16 %v557, %v556
    %v676 = vpack.c.b16 %v559, %v558
    %v677 = vpack.c.b16 %v561, %v560
    %v678 = vpack.c.b16 %v563, %v562
    %v679 = vpack.c.b16 %v565, %v564
    %v680 = vpack.c.b16 %v567, %v566
    %v681 = vpack.c.b16 %v569, %v568
    %v682 = vpack.c.b16 %v571, %v570
    %v683 = vpack.c.b16 %v573, %v572
    %v684 = vpack.c.b16 %v575, %v574
    %v685 = vpack.c.b16 %v577, %v576
    %v686 = vpack.c.b16 %v579, %v578
    %v687 = vpack.c.b16 %v581, %v580
    %v688 = vpack.c.b16 %v583, %v582
    %v689 = vpack.c.b16 %v585, %v584
    %v690 = vpack.c.b16 %v587, %v586
    %v691 = vpack.c.b16 %v589, %v588
    %v692 = vpack.c.b16 %v591, %v590
    %v693 = vpack.c.b16 %v593, %v592
    %v694 = vpack.c.b16 %v595, %v594
    %v695 = vpack.c.b16 %v597, %v596
    %v696 = vpack.c.b16 %v599, %v598
    %v697 = vpack.c.b16 %v601, %v600
    %v698 = vpack.c.b16 %v603, %v602
    %v699 = vpack.c.b16 %v605, %v604
    %v700 = vpack.c.b16 %v607, %v606
    %v701 = vpack.c.b16 %v609, %v608
    %v702 = vpack.c.b16 %v611, %v610
    %v703 = vpack.c.b16 %v613, %v612
    %v704 = vpack.c.b16 %v615, %v614
    %v705 = vpack.c.b16 %v617, %v616
    %v706 = vpack.c.b16 %v619, %v618
    %v707 = vpack.c.b16 %v621, %v620
    %v708 = vpack.c.b16 %v623, %v622
    %v709 = vpack.c.b16 %v625, %v624
    %v710 = vpack.c.b16 %v627, %v626
    %v711 = vpack.c.b16 %v629, %v628
    %v712 = vpack.c.b16 %v631, %v630
    %v713 = vpack.c.b16 %v633, %v632
    %v714 = vpack.c.b16 %v635, %v634
    %v715 = vpack.c.b16 %v637, %v636
    %v716 = vpack.c.b16 %v639, %v638
    %v717 = vpack.c.b16 %v641, %v640
    %v718 = vpack.c.b16 %v643, %v642
    %v719 = vpack.c.b16 %v645, %v644
    %v720 = vpack.c.b16 %v647, %v646
    %v721 = vpack.c.b16 %v649, %v648
    %v722 = vpack.c.b16 %v651, %v650
    %v723 = vpack.c.b16 %v653, %v652
    %v724 = vpack.c.b16 %v655, %v654
    %v725 = vpack.c.b16 %v657, %v656
    %v726 = vpack.c.b16 %v659, %v658
    %v727 = vpack.c.b16 %v661, %v660
    %v728 = vpack.c.b16 %v663, %v662
    %v729 = vpack.c.b16 %v665, %v664
    %794 = vmatprep.subr.bf16.mxu0 0
    %795 = vmatpush1.bf16.msra.mxu0 %v666
    %796 = vmatprep.subr.bf16.mxu0 0
    %797 = vmatpush1.bf16.msra.mxu0 %v667
    %798 = vmatprep.subr.bf16.mxu0 0
    %799 = vmatpush1.bf16.msra.mxu0 %v668
    %800 = vmatprep.subr.bf16.mxu0 0
    %801 = vmatpush1.bf16.msra.mxu0 %v669
    %802 = vmatprep.subr.bf16.mxu0 0
    %803 = vmatpush1.bf16.msra.mxu0 %v670
    %804 = vmatprep.subr.bf16.mxu0 0
    %805 = vmatpush1.bf16.msra.mxu0 %v671
    %806 = vmatprep.subr.bf16.mxu0 0
    %807 = vmatpush1.bf16.msra.mxu0 %v672
    %808 = vmatprep.subr.bf16.mxu0 0
    %809 = vmatpush1.bf16.msra.mxu0 %v673
    %810 = vmatprep.subr.bf16.mxu0 0
    %811 = vmatpush1.bf16.msra.mxu0 %v674
    %812 = vmatprep.subr.bf16.mxu0 0
    %813 = vmatpush1.bf16.msra.mxu0 %v675
    %814 = vmatprep.subr.bf16.mxu0 0
    %815 = vmatpush1.bf16.msra.mxu0 %v676
    %816 = vmatprep.subr.bf16.mxu0 0
    %817 = vmatpush1.bf16.msra.mxu0 %v677
    %818 = vmatprep.subr.bf16.mxu0 0
    %819 = vmatpush1.bf16.msra.mxu0 %v678
    %820 = vmatprep.subr.bf16.mxu0 0
    %821 = vmatpush1.bf16.msra.mxu0 %v679
    %822 = vmatprep.subr.bf16.mxu0 0
    %823 = vmatpush1.bf16.msra.mxu0 %v680
    %824 = vmatprep.subr.bf16.mxu0 0
    %825 = vmatpush1.bf16.msra.mxu0 %v681
    %826 = vmatprep.mubr.bf16.mxu0 %v252
    %827 = vmatmul.mubr.bf16.gmra.mrb[0].mxu0 %v251
    %v828 = vpop.f32.mrb[0].mxu0
    %v829 = vadd.f32 %v408, %v828
    %v830 = vpop.f32.mrb[0].mxu0
    %v831 = vpop.f32.mrb[0].mxu0
    %v832 = vadd.f32 %v408, %v831
    %v833 = vpop.f32.mrb[0].mxu0
    %834 = vmatprep.mubr.bf16.mxu0 %v260
    %835 = vmatmul.mubr.bf16.gmra.mrb[0].mxu0 %v259
    %v836 = vpop.f32.mrb[0].mxu0
    %v837 = vadd.f32 %v408, %v836
    %v838 = vpop.f32.mrb[0].mxu0
    %v839 = vpop.f32.mrb[0].mxu0
    %v840 = vadd.f32 %v408, %v839
    %v841 = vpop.f32.mrb[0].mxu0
    %842 = vmatprep.mubr.bf16.mxu0 %v268
    %843 = vmatmul.mubr.bf16.gmra.mrb[0].mxu0 %v267
    %v844 = vpop.f32.mrb[0].mxu0
    %v845 = vadd.f32 %v408, %v844
    %v846 = vpop.f32.mrb[0].mxu0
    %v847 = vpop.f32.mrb[0].mxu0
    %v848 = vadd.f32 %v408, %v847
    %v849 = vpop.f32.mrb[0].mxu0
    %850 = vdwg.mxu0
    %851 = vmatprep.subr.bf16.mxu0 0
    %852 = vmatpush1.bf16.msra.mxu0 %v682
    %853 = vmatprep.subr.bf16.mxu0 0
    %854 = vmatpush1.bf16.msra.mxu0 %v683
    %855 = vmatprep.subr.bf16.mxu0 0
    %856 = vmatpush1.bf16.msra.mxu0 %v684
    %857 = vmatprep.subr.bf16.mxu0 0
    %858 = vmatpush1.bf16.msra.mxu0 %v685
    %859 = vmatprep.subr.bf16.mxu0 0
    %860 = vmatpush1.bf16.msra.mxu0 %v686
    %861 = vmatprep.subr.bf16.mxu0 0
    %862 = vmatpush1.bf16.msra.mxu0 %v687
    %863 = vmatprep.subr.bf16.mxu0 0
    %864 = vmatpush1.bf16.msra.mxu0 %v688
    %865 = vmatprep.subr.bf16.mxu0 0
    %866 = vmatpush1.bf16.msra.mxu0 %v689
    %867 = vmatprep.subr.bf16.mxu0 0
    %868 = vmatpush1.bf16.msra.mxu0 %v690
    %869 = vmatprep.subr.bf16.mxu0 0
    %870 = vmatpush1.bf16.msra.mxu0 %v691
    %871 = vmatprep.subr.bf16.mxu0 0
    %872 = vmatpush1.bf16.msra.mxu0 %v692
    %873 = vmatprep.subr.bf16.mxu0 0
    %874 = vmatpush1.bf16.msra.mxu0 %v693
    %875 = vmatprep.subr.bf16.mxu0 0
    %876 = vmatpush1.bf16.msra.mxu0 %v694
    %877 = vmatprep.subr.bf16.mxu0 0
    %878 = vmatpush1.bf16.msra.mxu0 %v695
    %879 = vmatprep.subr.bf16.mxu0 0
    %880 = vmatpush1.bf16.msra.mxu0 %v696
    %881 = vmatprep.subr.bf16.mxu0 0
    %882 = vmatpush1.bf16.msra.mxu0 %v697
    %883 = vmatprep.mubr.bf16.mxu0 %v254
    %884 = vmatmul.mubr.bf16.gmra.mrb[0].mxu0 %v253
    %v885 = vpop.f32.mrb[0].mxu0
    %v886 = vadd.f32 %v829, %v885
    %v887 = vpop.f32.mrb[0].mxu0
    %v888 = vpop.f32.mrb[0].mxu0
    %v889 = vadd.f32 %v832, %v888
    %v890 = vpop.f32.mrb[0].mxu0
    %891 = vmatprep.mubr.bf16.mxu0 %v262
    %892 = vmatmul.mubr.bf16.gmra.mrb[0].mxu0 %v261
    %v893 = vpop.f32.mrb[0].mxu0
    %v894 = vadd.f32 %v837, %v893
    %v895 = vpop.f32.mrb[0].mxu0
    %v896 = vpop.f32.mrb[0].mxu0
    %v897 = vadd.f32 %v840, %v896
    %v898 = vpop.f32.mrb[0].mxu0
    %899 = vmatprep.mubr.bf16.mxu0 %v270
    %900 = vmatmul.mubr.bf16.gmra.mrb[0].mxu0 %v269
    %v901 = vpop.f32.mrb[0].mxu0
    %v902 = vadd.f32 %v845, %v901
    %v903 = vpop.f32.mrb[0].mxu0
    %v904 = vpop.f32.mrb[0].mxu0
    %v905 = vadd.f32 %v848, %v904
    %v906 = vpop.f32.mrb[0].mxu0
    %907 = vdwg.mxu0
    %908 = vmatprep.subr.bf16.mxu0 0
    %909 = vmatpush1.bf16.msra.mxu0 %v698
    %910 = vmatprep.subr.bf16.mxu0 0
    %911 = vmatpush1.bf16.msra.mxu0 %v699
    %912 = vmatprep.subr.bf16.mxu0 0
    %913 = vmatpush1.bf16.msra.mxu0 %v700
    %914 = vmatprep.subr.bf16.mxu0 0
    %915 = vmatpush1.bf16.msra.mxu0 %v701
    %916 = vmatprep.subr.bf16.mxu0 0
    %917 = vmatpush1.bf16.msra.mxu0 %v702
    %918 = vmatprep.subr.bf16.mxu0 0
    %919 = vmatpush1.bf16.msra.mxu0 %v703
    %920 = vmatprep.subr.bf16.mxu0 0
    %921 = vmatpush1.bf16.msra.mxu0 %v704
    %922 = vmatprep.subr.bf16.mxu0 0
    %923 = vmatpush1.bf16.msra.mxu0 %v705
    %924 = vmatprep.subr.bf16.mxu0 0
    %925 = vmatpush1.bf16.msra.mxu0 %v706
    %926 = vmatprep.subr.bf16.mxu0 0
    %927 = vmatpush1.bf16.msra.mxu0 %v707
    %928 = vmatprep.subr.bf16.mxu0 0
    %929 = vmatpush1.bf16.msra.mxu0 %v708
    %930 = vmatprep.subr.bf16.mxu0 0
    %931 = vmatpush1.bf16.msra.mxu0 %v709
    %932 = vmatprep.subr.bf16.mxu0 0
    %933 = vmatpush1.bf16.msra.mxu0 %v710
    %934 = vmatprep.subr.bf16.mxu0 0
    %935 = vmatpush1.bf16.msra.mxu0 %v711
    %936 = vmatprep.subr.bf16.mxu0 0
    %937 = vmatpush1.bf16.msra.mxu0 %v712
    %938 = vmatprep.subr.bf16.mxu0 0
    %939 = vmatpush1.bf16.msra.mxu0 %v713
    %940 = vmatprep.mubr.bf16.mxu0 %v256
    %941 = vmatmul.mubr.bf16.gmra.mrb[0].mxu0 %v255
    %v942 = vpop.f32.mrb[0].mxu0
    %v943 = vadd.f32 %v886, %v942
    %v944 = vpop.f32.mrb[0].mxu0
    %v945 = vpop.f32.mrb[0].mxu0
    %v946 = vadd.f32 %v889, %v945
    %v947 = vpop.f32.mrb[0].mxu0
    %948 = vmatprep.mubr.bf16.mxu0 %v264
    %949 = vmatmul.mubr.bf16.gmra.mrb[0].mxu0 %v263
    %v950 = vpop.f32.mrb[0].mxu0
    %v951 = vadd.f32 %v894, %v950
    %v952 = vpop.f32.mrb[0].mxu0
    %v953 = vpop.f32.mrb[0].mxu0
    %v954 = vadd.f32 %v897, %v953
    %v955 = vpop.f32.mrb[0].mxu0
    %956 = vmatprep.mubr.bf16.mxu0 %v272
    %957 = vmatmul.mubr.bf16.gmra.mrb[0].mxu0 %v271
    %v958 = vpop.f32.mrb[0].mxu0
    %v959 = vadd.f32 %v902, %v958
    %v960 = vpop.f32.mrb[0].mxu0
    %v961 = vpop.f32.mrb[0].mxu0
    %v962 = vadd.f32 %v905, %v961
    %v963 = vpop.f32.mrb[0].mxu0
    %964 = vdwg.mxu0
    %965 = vmatprep.subr.bf16.mxu0 0
    %966 = vmatpush1.bf16.msra.mxu0 %v714
    %967 = vmatprep.subr.bf16.mxu0 0
    %968 = vmatpush1.bf16.msra.mxu0 %v715
    %969 = vmatprep.subr.bf16.mxu0 0
    %970 = vmatpush1.bf16.msra.mxu0 %v716
    %971 = vmatprep.subr.bf16.mxu0 0
    %972 = vmatpush1.bf16.msra.mxu0 %v717
    %973 = vmatprep.subr.bf16.mxu0 0
    %974 = vmatpush1.bf16.msra.mxu0 %v718
    %975 = vmatprep.subr.bf16.mxu0 0
    %976 = vmatpush1.bf16.msra.mxu0 %v719
    %977 = vmatprep.subr.bf16.mxu0 0
    %978 = vmatpush1.bf16.msra.mxu0 %v720
    %979 = vmatprep.subr.bf16.mxu0 0
    %980 = vmatpush1.bf16.msra.mxu0 %v721
    %981 = vmatprep.subr.bf16.mxu0 0
    %982 = vmatpush1.bf16.msra.mxu0 %v722
    %983 = vmatprep.subr.bf16.mxu0 0
    %984 = vmatpush1.bf16.msra.mxu0 %v723
    %985 = vmatprep.subr.bf16.mxu0 0
    %986 = vmatpush1.bf16.msra.mxu0 %v724
    %987 = vmatprep.subr.bf16.mxu0 0
    %988 = vmatpush1.bf16.msra.mxu0 %v725
    %989 = vmatprep.subr.bf16.mxu0 0
    %990 = vmatpush1.bf16.msra.mxu0 %v726
    %991 = vmatprep.subr.bf16.mxu0 0
    %992 = vmatpush1.bf16.msra.mxu0 %v727
    %993 = vmatprep.subr.bf16.mxu0 0
    %994 = vmatpush1.bf16.msra.mxu0 %v728
    %995 = vmatprep.subr.bf16.mxu0 0
    %996 = vmatpush1.bf16.msra.mxu0 %v729
    %997 = vmatprep.mubr.bf16.mxu0 %v258
    %998 = vmatmul.mubr.bf16.gmra.mrb[0].mxu0 %v257
    %v999 = vpop.f32.mrb[0].mxu0
    %v1000 = vadd.f32 %v943, %v999
    %v1001 = vpop.f32.mrb[0].mxu0
    %v1002 = vpop.f32.mrb[0].mxu0
    %v1003 = vadd.f32 %v946, %v1002
    %v1004 = vpop.f32.mrb[0].mxu0
    %1005 = vmatprep.mubr.bf16.mxu0 %v266
    %1006 = vmatmul.mubr.bf16.gmra.mrb[0].mxu0 %v265
    %v1007 = vpop.f32.mrb[0].mxu0
    %v1008 = vadd.f32 %v951, %v1007
    %v1009 = vpop.f32.mrb[0].mxu0
    %v1010 = vpop.f32.mrb[0].mxu0
    %v1011 = vadd.f32 %v954, %v1010
    %v1012 = vpop.f32.mrb[0].mxu0
    %1013 = vmatprep.mubr.bf16.mxu0 %v274
    %1014 = vmatmul.mubr.bf16.gmra.mrb[0].mxu0 %v273
    %v1015 = vpop.f32.mrb[0].mxu0
    %v1016 = vadd.f32 %v959, %v1015
    %v1017 = vpop.f32.mrb[0].mxu0
    %v1018 = vpop.f32.mrb[0].mxu0
    %v1019 = vadd.f32 %v962, %v1018
    %v1020 = vpop.f32.mrb[0].mxu0
    %1021 = vdwg.mxu0
    %v1022 = vmax.f32 %v1000, 0.0
    %v1023 = vmax.f32 %v1003, 0.0
    %v1024 = vmax.f32 %v1008, 0.0
    %v1025 = vmax.f32 %v1011, 0.0
    %v1026 = vmax.f32 %v1016, 0.0
    %v1027 = vmax.f32 %v1019, 0.0
    %v1028 = vpack.c.bf16 %v1023, %v1022
    %v1029 = vpack.c.bf16 %v1025, %v1024
    %v1030 = vpack.c.bf16 %v1027, %v1026
    %v1031 = vld [vmem:[%s5] sm:$0xf]
    %v1032 = vld [vmem:[%s5 + $0x4] sm:$0xf]
    %v1033 = vld [vmem:[%s5 + $0x8] sm:$0xf]
    %v1034 = vld [vmem:[%s5 + $0xc] sm:$0xf]
    %v1035 = vld [vmem:[%s5 + $0x10] sm:$0xf]
    %v1036 = vld [vmem:[%s5 + $0x14] sm:$0xf]
    %v1037 = vld [vmem:[%s5 + $0x18] sm:$0xf]
    %v1038 = vld [vmem:[%s5 + $0x1c] sm:$0xf]
    %v1039 = vld [vmem:[%s5 + $0x20] sm:$0xf]
    %v1040 = vld [vmem:[%s5 + $0x24] sm:$0xf]
    %v1041 = vld [vmem:[%s5 + $0x28] sm:$0xf]
    %v1042 = vld [vmem:[%s5 + $0x2c] sm:$0xf]
    %v1043 = vld [vmem:[%s5 + $0x30] sm:$0xf]
    %v1044 = vld [vmem:[%s5 + $0x34] sm:$0xf]
    %v1045 = vld [vmem:[%s5 + $0x38] sm:$0xf]
    %v1046 = vld [vmem:[%s5 + $0x3c] sm:$0xf]
    %v1047 = vld [vmem:[%s6] sm:$0x1]
    %v1049 = vlaneseq
    %v1050 = vshrl.u32 %v1049, 7
    %v1051 = vsub.s32 0, %v1050
    %v1052 = vrot.slane %v1047, %v1051
    %v1070 = vunpack.c.l.b16 %v1031
    %v1071 = vunpack.c.l.b16 %v1032
    %v1072 = vunpack.c.l.b16 %v1033
    %v1073 = vunpack.c.l.b16 %v1034
    %v1074 = vunpack.c.l.b16 %v1035
    %v1075 = vunpack.c.l.b16 %v1036
    %v1076 = vunpack.c.l.b16 %v1037
    %v1077 = vunpack.c.l.b16 %v1038
    %v1078 = vunpack.c.l.b16 %v1039
    %v1079 = vunpack.c.l.b16 %v1040
    %v1080 = vunpack.c.l.b16 %v1041
    %v1081 = vunpack.c.l.b16 %v1042
    %v1082 = vunpack.c.l.b16 %v1043
    %v1083 = vunpack.c.l.b16 %v1044
    %v1084 = vunpack.c.l.b16 %v1045
    %v1085 = vunpack.c.l.b16 %v1046
    %v1086 = vpack.c.b16 %v1071, %v1070
    %v1087 = vpack.c.b16 %v1073, %v1072
    %v1088 = vpack.c.b16 %v1075, %v1074
    %v1089 = vpack.c.b16 %v1077, %v1076
    %v1090 = vpack.c.b16 %v1079, %v1078
    %v1091 = vpack.c.b16 %v1081, %v1080
    %v1092 = vpack.c.b16 %v1083, %v1082
    %v1093 = vpack.c.b16 %v1085, %v1084
    %1102 = vmatprep.subr.bf16.mxu0 0
    %1103 = vmatpush1.bf16.msra.mxu0 %v1086
    %1104 = vmatprep.subr.bf16.mxu0 0
    %1105 = vmatpush1.bf16.msra.mxu0 %v1087
    %1106 = vmatprep.subr.bf16.mxu0 0
    %1107 = vmatpush1.bf16.msra.mxu0 %v1088
    %1108 = vmatprep.subr.bf16.mxu0 0
    %1109 = vmatpush1.bf16.msra.mxu0 %v1089
    %1110 = vmatprep.subr.bf16.mxu0 0
    %1111 = vmatpush1.bf16.msra.mxu0 %v1090
    %1112 = vmatprep.subr.bf16.mxu0 0
    %1113 = vmatpush1.bf16.msra.mxu0 %v1091
    %1114 = vmatprep.subr.bf16.mxu0 0
    %1115 = vmatpush1.bf16.msra.mxu0 %v1092
    %1116 = vmatprep.subr.bf16.mxu0 0
    %1117 = vmatpush1.bf16.msra.mxu0 %v1093
    %1118 = vmatprep.subr.bf16.mxu0 0
    %1119 = vmatpush1.bf16.msra.mxu0 0
    %1120 = vmatprep.subr.bf16.mxu0 0
    %1121 = vmatpush1.bf16.msra.mxu0 0
    %1122 = vmatprep.subr.bf16.mxu0 0
    %1123 = vmatpush1.bf16.msra.mxu0 0
    %1124 = vmatprep.subr.bf16.mxu0 0
    %1125 = vmatpush1.bf16.msra.mxu0 0
    %1126 = vmatprep.subr.bf16.mxu0 0
    %1127 = vmatpush1.bf16.msra.mxu0 0
    %1128 = vmatprep.subr.bf16.mxu0 0
    %1129 = vmatpush1.bf16.msra.mxu0 0
    %1130 = vmatprep.subr.bf16.mxu0 0
    %1131 = vmatpush1.bf16.msra.mxu0 0
    %1132 = vmatprep.subr.bf16.mxu0 0
    %1133 = vmatpush1.bf16.msra.mxu0 0
    %1134 = vmatprep.mubr.bf16.mxu0 0
    %1135 = vmatmul.mubr.bf16.gmra.mrb[0].mxu0 %v1028
    %v1136 = vpop.f32.mrb[0].mxu0
    %v1137 = vadd.f32 %v1052, %v1136
    %v1138 = vpop.f32.mrb[0].mxu0
    %v1139 = vpop.f32.mrb[0].mxu0
    %v1140 = vadd.f32 %v1052, %v1139
    %v1141 = vpop.f32.mrb[0].mxu0
    %1142 = vmatprep.mubr.bf16.mxu0 0
    %1143 = vmatmul.mubr.bf16.gmra.mrb[0].mxu0 %v1029
    %v1144 = vpop.f32.mrb[0].mxu0
    %v1145 = vadd.f32 %v1052, %v1144
    %v1146 = vpop.f32.mrb[0].mxu0
    %v1147 = vpop.f32.mrb[0].mxu0
    %v1148 = vadd.f32 %v1052, %v1147
    %v1149 = vpop.f32.mrb[0].mxu0
    %1150 = vmatprep.mubr.bf16.mxu0 0
    %1151 = vmatmul.mubr.bf16.gmra.mrb[0].mxu0 %v1030
    %v1152 = vpop.f32.mrb[0].mxu0
    %v1153 = vadd.f32 %v1052, %v1152
    %v1154 = vpop.f32.mrb[0].mxu0
    %v1155 = vpop.f32.mrb[0].mxu0
    %v1156 = vadd.f32 %v1052, %v1155
    %v1157 = vpop.f32.mrb[0].mxu0
    %1158 = vdwg.mxu0
    %1159 = vst [vmem:[%s7] sm:$0xff] %v1137
    %1160 = vst [vmem:[%s7 + $0x8] sm:$0xff] %v1140
    %1161 = vst [vmem:[%s7 + $0x10] sm:$0xff] %v1145
    %1162 = vst [vmem:[%s7 + $0x18] sm:$0xff] %v1148
    %1163 = vst [vmem:[%s7 + $0x20] sm:$0xff] %v1153
    %1164 = vst [vmem:[%s7 + $0x28] sm:$0xff] %v1156
    // Predicated region
    $region34: #{triplet_net_forward.1} parent=1 // pred_check
      _
    $region35: #{triplet_net_forward.1} parent=1 // pred_check_branch
      %1166 = sbr.rel (0) target = $region37
    $region36: #{triplet_net_forward.1} parent=1 // pred_region
      _
    $region37: #{triplet_net_forward.1} parent=1 // pred_fallthru
      _
    // Predicated region
    $region38: #{triplet_net_forward.1} parent=1 // pred_check
      _
    $region39: #{triplet_net_forward.1} parent=1 // pred_check_branch
      %1168 = sbr.rel (0) target = $region41
    $region40: #{triplet_net_forward.1} parent=1 // pred_region
      _
    $region41: #{triplet_net_forward.1} parent=1 // pred_fallthru
      _
    %1169 = vsyncpa [#allocation4], 1

</llo_original>
